<compile_context>
chip_gen: v6e
topology: v6e:2x2x1
jax: 0.10.0
libtpu: 0.0.40
codegen_flags: <defaults>
</compile_context>

<pallas_src>
import functools
import math

import jax
import jax.numpy as jnp
from jax.experimental import pallas as pl
from jax.experimental.pallas import tpu as pltpu


def _round_up(x, m):
    return ((x + m - 1) // m) * m


def _phrase_kernel(kernel_sizes, halo, tile_l, seq_len, matmul_dtype,
                   x_ref, halo_ref, w_ref, b_ref, o_ref):
    """One (batch, sequence-tile) grid step.

    x_ref    : (1, tile_l, H)      raw-dtype input tile (tail rows of the last,
                                   partial tile are DMA-undefined -> masked)
    halo_ref : (1, 1, 2*halo, H)   rows preceding / following this tile
                                   (zeros at the sequence edges)
    w_ref    : (total_k, H, H)     bf16 VMEM-resident conv taps; w[tap] is the
                                   (H_in, H_out) matmul weight of that tap
    b_ref    : (n_branches, H)     f32 VMEM-resident biases
    o_ref    : (1, tile_l, H)      output tile (partial last tile is clipped)
    """
    j = pl.program_id(1)

    tile = x_ref[0]                                       # (tile_l, H)
    # Zero rows at/after the end of the sequence: they are undefined for the
    # partial last tile and must act as Conv1d zero padding for valid outputs
    # within max_pad rows of the end.
    row = jax.lax.broadcasted_iota(jnp.int32, tile.shape, 0)
    tile = jnp.where(row < seq_len - j * tile_l, tile, 0.0)

    halos = halo_ref[0, 0]                                # (2*halo, H)
    window = jnp.concatenate([halos[:halo], tile, halos[halo:]], axis=0)
    window = window.astype(matmul_dtype)                  # VPU cast, in-kernel

    y = None
    tap = 0
    for bi, k in enumerate(kernel_sizes):
        pad = k // 2
        off = halo - pad                                  # static window offset
        acc = None
        for t in range(k):                                # unrolled taps -> MXU
            part = jnp.dot(window[off + t: off + t + tile_l, :],
                           w_ref[tap + t],
                           preferred_element_type=jnp.float32)
            acc = part if acc is None else acc + part
        tap += k
        acc = acc + b_ref[bi:bi + 1, :]                   # f32 bias broadcast
        # Running max over conv branches.  Starting from the first branch is
        # exactly equivalent to PyTorch's `zeros - 1e6` init because the final
        # ReLU clamps anything below 0 anyway.
        y = acc if y is None else jnp.maximum(y, acc)

    o_ref[0] = jnp.maximum(y, 0.0).astype(o_ref.dtype)    # ReLU


def phrase_level_extractor_v2(x, weights, biases, kernel_sizes, *, tile_l=512,
                              matmul_dtype=jnp.bfloat16, out_dtype=None):
    """x: (B, L, H). weights[i]: (k_i, H_in, H_out). biases[i]: (H,).

    weights[i][t] is the (H_in, H_out) matmul weight of tap t, i.e. the
    transpose of PyTorch's Conv1d weight[:, :, t].
    """
    assert len(kernel_sizes) > 0
    assert all(k % 2 == 1 for k in kernel_sizes), \
        "padding=k//2 is only length-preserving for odd kernel sizes"
    B, L, H = x.shape
    out_dtype = x.dtype if out_dtype is None else out_dtype

    max_pad = max(k // 2 for k in kernel_sizes)
    halo = _round_up(max(max_pad, 1), 8)            # sublane-aligned halo >= 8

    # Sequence tile: multiple of 16 (bf16 sublane packing), >= halo, clamped to
    # the (rounded-up) sequence length so tiny inputs stay a single tile.
    tile_l = max(16, min(int(tile_l), _round_up(L, 16)))
    tile_l = _round_up(max(tile_l, halo), 16)
    num_tiles = pl.cdiv(L, tile_l)

    # Small halo "sidecar": for each tile, the `halo` rows preceding and
    # following it (zeros at the sequence edges -> Conv1d's own zero padding).
    # This replaces the previous full HBM copy of overlapping windows.
    zeros_h = jnp.zeros((B, halo, H), x.dtype)
    side = []
    for j in range(num_tiles):
        s, e = j * tile_l, (j + 1) * tile_l
        pre = zeros_h if j == 0 else x[:, s - halo:s, :]
        if e >= L:
            post = zeros_h
        else:
            seg = x[:, e:min(e + halo, L), :]
            if seg.shape[1] < halo:
                seg = jnp.pad(seg, ((0, 0), (0, halo - seg.shape[1]), (0, 0)))
            post = seg
        side.append(jnp.concatenate([pre, post], axis=1))
    sidecar = jnp.stack(side, axis=1)               # (B, num_tiles, 2*halo, H)

    # All conv taps / biases stacked into single VMEM-resident arrays
    # (one DMA each, never double-buffered per grid step).
    w_all = jnp.concatenate(list(weights), axis=0).astype(matmul_dtype)
    b_all = jnp.stack(list(biases), axis=0).astype(jnp.float32)

    in_specs = [
        pl.BlockSpec((1, tile_l, H), lambda b, j: (b, j, 0)),
        pl.BlockSpec((1, 1, 2 * halo, H), lambda b, j: (b, j, 0, 0)),
        pl.BlockSpec(memory_space=pltpu.MemorySpace.VMEM),
        pl.BlockSpec(memory_space=pltpu.MemorySpace.VMEM),
    ]
    out_spec = pl.BlockSpec((1, tile_l, H), lambda b, j: (b, j, 0))

    def _nbytes(a):
        return a.size * a.dtype.itemsize

    lane_h = _round_up(H, 128)                      # layout-padded lane width
    sub_h = _round_up(H, 16)
    total_k = sum(kernel_sizes)
    est_vmem = (2 * tile_l * lane_h * x.dtype.itemsize          # input tiles (x2 buf)
                + 2 * 2 * halo * lane_h * x.dtype.itemsize      # sidecar (x2 buf)
                + 2 * tile_l * lane_h * jnp.dtype(out_dtype).itemsize
                + total_k * sub_h * lane_h * 2 + 8 * lane_h * 4  # residents
                + 8 * tile_l * lane_h * 4)                      # window/acc/y live f32
    # v7x has only 64 MiB physical VMEM per TensorCore: stay well under it.
    vmem_limit = int(min(48 << 20, max(32 << 20, 1.5 * est_vmem + (2 << 20))))

    cost = pl.CostEstimate(
        flops=2 * B * L * H * H * total_k,
        transcendentals=0,
        bytes_accessed=(_nbytes(x) + _nbytes(sidecar) + _nbytes(w_all)
                        + _nbytes(b_all)
                        + B * L * H * jnp.dtype(out_dtype).itemsize),
    )

    kernel = functools.partial(_phrase_kernel, tuple(kernel_sizes), halo,
                               tile_l, L, matmul_dtype)
    return pl.pallas_call(
        kernel,
        out_shape=jax.ShapeDtypeStruct((B, L, H), out_dtype),
        grid=(B, num_tiles),
        in_specs=in_specs,
        out_specs=out_spec,
        compiler_params=pltpu.CompilerParams(
            dimension_semantics=("parallel", "parallel"),
            vmem_limit_bytes=vmem_limit),
        cost_estimate=cost,
    )(x, sidecar, w_all, b_all)


def reference(x, weights, biases, kernel_sizes, *, matmul_dtype=jnp.bfloat16):
    """Plain-JAX replica of the PyTorch forward (for verification)."""
    B, L, H = x.shape
    y = jnp.full((B, L, H), -1.0e6, dtype=jnp.float32)
    for w, b, k in zip(weights, biases, kernel_sizes):
        pad = k // 2
        xp = jnp.pad(x, ((0, 0), (pad, pad), (0, 0)))
        acc = jnp.zeros((B, L, H), dtype=jnp.float32)
        for t in range(k):
            acc = acc + jnp.einsum(
                "blh,hg->blg",
                xp[:, t:t + L, :].astype(matmul_dtype),
                w[t].astype(matmul_dtype),
                preferred_element_type=jnp.float32)
        acc = acc + b[None, None, :]
        y = jnp.maximum(y, acc)
    return jnp.maximum(y, 0.0)


if __name__ == "__main__":
    kernel_sizes = [1, 3, 5]   # odd sizes, as the PyTorch module assumes
    configs = [
        dict(B=2, L=16, H=32, tile_l=512),    # small module-spec shape, 1 tile
        dict(B=2, L=320, H=128, tile_l=128),  # multi-tile + partial last tile
    ]

    key = jax.random.PRNGKey(0)
    for cfg in configs:
        B, L, H = cfg["B"], cfg["L"], cfg["H"]
        key, kx = jax.random.split(key)
        x = jax.random.normal(kx, (B, L, H), dtype=jnp.float32)

        # Deterministic parameter init.  PyTorch Conv1d weight is (out, in, k);
        # our per-tap matmul weight w[t] = weight[:, :, t].T stored as
        # (k, H_in, H_out).
        weights, biases = [], []
        for k in kernel_sizes:
            key, kw, kb = jax.random.split(key, 3)
            bound = 1.0 / math.sqrt(H * k)
            weights.append(
                jax.random.uniform(kw, (k, H, H), jnp.float32, -bound, bound))
            biases.append(
                jax.random.uniform(kb, (H,), jnp.float32, -bound, bound))

        out = phrase_level_extractor_v2(
            x, weights, biases, kernel_sizes, tile_l=cfg["tile_l"])
        out = jax.block_until_ready(out)
        assert out.shape == (B, L, H)

        # Tight check vs a bf16-matmul / f32-accumulate reference.
        ref_bf16 = reference(x, weights, biases, kernel_sizes)
        assert bool(jnp.allclose(out, ref_bf16, atol=2e-3, rtol=2e-3)), \
            "mismatch vs bf16 reference"
        # Loose sanity check vs the pure-f32 PyTorch-equivalent reference.
        ref_f32 = reference(x, weights, biases, kernel_sizes,
                            matmul_dtype=jnp.float32)
        assert bool(jnp.allclose(out, ref_f32, atol=5e-2, rtol=5e-2)), \
            "mismatch vs f32 reference"

    print("KERNEL_OK")
</pallas_src>

<mosaic_0001>
module attributes {stable_mosaic.version = 11 : i64} {
  func.func @_phrase_kernel(%arg0: i32, %arg1: i32, %arg2: memref<1x16x32xf32, #tpu.memory_space<vmem>>, %arg3: memref<1x1x16x32xf32, #tpu.memory_space<vmem>>, %arg4: memref<9x32x32xbf16, #tpu.memory_space<vmem>>, %arg5: memref<3x32xf32, #tpu.memory_space<vmem>>, %arg6: memref<1x16x32xf32, #tpu.memory_space<vmem>>) attributes {dimension_semantics = [#tpu.dimension_semantics<parallel>, #tpu.dimension_semantics<parallel>], iteration_bounds = array<i64: 2, 1>, scalar_prefetch = 0 : i64, scratch_operands = 0 : i64, tpu.core_type = #tpu.core_type<tc>, window_params = [{transform_indices = @transform_0, window_bounds = array<i64: 1, 16, 32>}, {transform_indices = @transform_1, window_bounds = array<i64: 1, 1, 16, 32>}, {pipeline_mode = #tpu.pipeline_mode<synchronous>, transform_indices = @transform_2, window_bounds = array<i64: 9, 32, 32>}, {pipeline_mode = #tpu.pipeline_mode<synchronous>, transform_indices = @transform_3, window_bounds = array<i64: 3, 32>}, {transform_indices = @transform_4, window_bounds = array<i64: 1, 16, 32>}]} {
    %c0 = arith.constant 0 : index
    %c0_0 = arith.constant 0 : index
    %c0_1 = arith.constant 0 : index
    %0 = vector.load %arg2[%c0, %c0_0, %c0_1] : memref<1x16x32xf32, #tpu.memory_space<vmem>>, vector<1x16x32xf32>
    %1 = vector.shape_cast %0 : vector<1x16x32xf32> to vector<16x32xf32>
    %2 = tpu.iota {dimensions = array<i32: 0>} : vector<16x32xi32>
    %c16_i32 = arith.constant 16 : i32
    %3 = arith.muli %arg1, %c16_i32 : i32
    %c16_i32_2 = arith.constant 16 : i32
    %4 = arith.subi %c16_i32_2, %3 : i32
    %5 = vector.broadcast %4 : i32 to vector<16x32xi32>
    %6 = arith.cmpi slt, %2, %5 : vector<16x32xi32>
    %cst = arith.constant 0.000000e+00 : f32
    %7 = vector.broadcast %cst : f32 to vector<16x32xf32>
    %8 = arith.select %6, %1, %7 : vector<16x32xi1>, vector<16x32xf32>
    %c0_3 = arith.constant 0 : index
    %c0_4 = arith.constant 0 : index
    %c0_5 = arith.constant 0 : index
    %c0_6 = arith.constant 0 : index
    %9 = vector.load %arg3[%c0_3, %c0_4, %c0_5, %c0_6] : memref<1x1x16x32xf32, #tpu.memory_space<vmem>>, vector<1x1x16x32xf32>
    %10 = vector.shape_cast %9 : vector<1x1x16x32xf32> to vector<16x32xf32>
    %11 = vector.extract_strided_slice %10 {offsets = [0, 0], sizes = [8, 32], strides = [1, 1]} : vector<16x32xf32> to vector<8x32xf32>
    %12 = vector.extract_strided_slice %10 {offsets = [8, 0], sizes = [8, 32], strides = [1, 1]} : vector<16x32xf32> to vector<8x32xf32>
    %13 = tpu.concatenate %11, %8, %12 in 0 : vector<8x32xf32>, vector<16x32xf32>, vector<8x32xf32> -> vector<32x32xf32>
    %14 = arith.truncf %13 : vector<32x32xf32> to vector<32x32xbf16>
    %15 = vector.extract_strided_slice %14 {offsets = [8, 0], sizes = [16, 32], strides = [1, 1]} : vector<32x32xbf16> to vector<16x32xbf16>
    %c0_7 = arith.constant 0 : index
    %c0_8 = arith.constant 0 : index
    %c0_9 = arith.constant 0 : index
    %16 = vector.load %arg4[%c0_7, %c0_8, %c0_9] : memref<9x32x32xbf16, #tpu.memory_space<vmem>>, vector<1x32x32xbf16>
    %17 = vector.shape_cast %16 : vector<1x32x32xbf16> to vector<32x32xbf16>
    %cst_10 = arith.constant dense<0.000000e+00> : vector<16x32xf32>
    %18 = tpu.matmul %15, %17, %cst_10 {dimension_numbers = #tpu.dot_dimension_numbers<[1], [0], [0], [1], [0, 0, 1, 1], [], []>} : vector<16x32xbf16>, vector<32x32xbf16>, vector<16x32xf32> -> vector<16x32xf32>
    %c0_11 = arith.constant 0 : index
    %c0_12 = arith.constant 0 : index
    %19 = vector.load %arg5[%c0_11, %c0_12] : memref<3x32xf32, #tpu.memory_space<vmem>>, vector<1x32xf32>
    %20 = vector.broadcast %19 : vector<1x32xf32> to vector<16x32xf32>
    %21 = arith.addf %18, %20 : vector<16x32xf32>
    %22 = vector.extract_strided_slice %14 {offsets = [7, 0], sizes = [16, 32], strides = [1, 1]} : vector<32x32xbf16> to vector<16x32xbf16>
    %c1 = arith.constant 1 : index
    %c0_13 = arith.constant 0 : index
    %c0_14 = arith.constant 0 : index
    %23 = vector.load %arg4[%c1, %c0_13, %c0_14] : memref<9x32x32xbf16, #tpu.memory_space<vmem>>, vector<1x32x32xbf16>
    %24 = vector.shape_cast %23 : vector<1x32x32xbf16> to vector<32x32xbf16>
    %cst_15 = arith.constant dense<0.000000e+00> : vector<16x32xf32>
    %25 = tpu.matmul %22, %24, %cst_15 {dimension_numbers = #tpu.dot_dimension_numbers<[1], [0], [0], [1], [0, 0, 1, 1], [], []>} : vector<16x32xbf16>, vector<32x32xbf16>, vector<16x32xf32> -> vector<16x32xf32>
    %26 = vector.extract_strided_slice %14 {offsets = [8, 0], sizes = [16, 32], strides = [1, 1]} : vector<32x32xbf16> to vector<16x32xbf16>
    %c2 = arith.constant 2 : index
    %c0_16 = arith.constant 0 : index
    %c0_17 = arith.constant 0 : index
    %27 = vector.load %arg4[%c2, %c0_16, %c0_17] : memref<9x32x32xbf16, #tpu.memory_space<vmem>>, vector<1x32x32xbf16>
    %28 = vector.shape_cast %27 : vector<1x32x32xbf16> to vector<32x32xbf16>
    %cst_18 = arith.constant dense<0.000000e+00> : vector<16x32xf32>
    %29 = tpu.matmul %26, %28, %cst_18 {dimension_numbers = #tpu.dot_dimension_numbers<[1], [0], [0], [1], [0, 0, 1, 1], [], []>} : vector<16x32xbf16>, vector<32x32xbf16>, vector<16x32xf32> -> vector<16x32xf32>
    %30 = arith.addf %25, %29 : vector<16x32xf32>
    %31 = vector.extract_strided_slice %14 {offsets = [9, 0], sizes = [16, 32], strides = [1, 1]} : vector<32x32xbf16> to vector<16x32xbf16>
    %c3 = arith.constant 3 : index
    %c0_19 = arith.constant 0 : index
    %c0_20 = arith.constant 0 : index
    %32 = vector.load %arg4[%c3, %c0_19, %c0_20] : memref<9x32x32xbf16, #tpu.memory_space<vmem>>, vector<1x32x32xbf16>
    %33 = vector.shape_cast %32 : vector<1x32x32xbf16> to vector<32x32xbf16>
    %cst_21 = arith.constant dense<0.000000e+00> : vector<16x32xf32>
    %34 = tpu.matmul %31, %33, %cst_21 {dimension_numbers = #tpu.dot_dimension_numbers<[1], [0], [0], [1], [0, 0, 1, 1], [], []>} : vector<16x32xbf16>, vector<32x32xbf16>, vector<16x32xf32> -> vector<16x32xf32>
    %35 = arith.addf %30, %34 : vector<16x32xf32>
    %c1_22 = arith.constant 1 : index
    %c0_23 = arith.constant 0 : index
    %36 = vector.load %arg5[%c1_22, %c0_23] : memref<3x32xf32, #tpu.memory_space<vmem>>, vector<1x32xf32>
    %37 = vector.broadcast %36 : vector<1x32xf32> to vector<16x32xf32>
    %38 = arith.addf %35, %37 : vector<16x32xf32>
    %39 = arith.maximumf %21, %38 : vector<16x32xf32>
    %40 = vector.extract_strided_slice %14 {offsets = [6, 0], sizes = [16, 32], strides = [1, 1]} : vector<32x32xbf16> to vector<16x32xbf16>
    %c4 = arith.constant 4 : index
    %c0_24 = arith.constant 0 : index
    %c0_25 = arith.constant 0 : index
    %41 = vector.load %arg4[%c4, %c0_24, %c0_25] : memref<9x32x32xbf16, #tpu.memory_space<vmem>>, vector<1x32x32xbf16>
    %42 = vector.shape_cast %41 : vector<1x32x32xbf16> to vector<32x32xbf16>
    %cst_26 = arith.constant dense<0.000000e+00> : vector<16x32xf32>
    %43 = tpu.matmul %40, %42, %cst_26 {dimension_numbers = #tpu.dot_dimension_numbers<[1], [0], [0], [1], [0, 0, 1, 1], [], []>} : vector<16x32xbf16>, vector<32x32xbf16>, vector<16x32xf32> -> vector<16x32xf32>
    %44 = vector.extract_strided_slice %14 {offsets = [7, 0], sizes = [16, 32], strides = [1, 1]} : vector<32x32xbf16> to vector<16x32xbf16>
    %c5 = arith.constant 5 : index
    %c0_27 = arith.constant 0 : index
    %c0_28 = arith.constant 0 : index
    %45 = vector.load %arg4[%c5, %c0_27, %c0_28] : memref<9x32x32xbf16, #tpu.memory_space<vmem>>, vector<1x32x32xbf16>
    %46 = vector.shape_cast %45 : vector<1x32x32xbf16> to vector<32x32xbf16>
    %cst_29 = arith.constant dense<0.000000e+00> : vector<16x32xf32>
    %47 = tpu.matmul %44, %46, %cst_29 {dimension_numbers = #tpu.dot_dimension_numbers<[1], [0], [0], [1], [0, 0, 1, 1], [], []>} : vector<16x32xbf16>, vector<32x32xbf16>, vector<16x32xf32> -> vector<16x32xf32>
    %48 = arith.addf %43, %47 : vector<16x32xf32>
    %49 = vector.extract_strided_slice %14 {offsets = [8, 0], sizes = [16, 32], strides = [1, 1]} : vector<32x32xbf16> to vector<16x32xbf16>
    %c6 = arith.constant 6 : index
    %c0_30 = arith.constant 0 : index
    %c0_31 = arith.constant 0 : index
    %50 = vector.load %arg4[%c6, %c0_30, %c0_31] : memref<9x32x32xbf16, #tpu.memory_space<vmem>>, vector<1x32x32xbf16>
    %51 = vector.shape_cast %50 : vector<1x32x32xbf16> to vector<32x32xbf16>
    %cst_32 = arith.constant dense<0.000000e+00> : vector<16x32xf32>
    %52 = tpu.matmul %49, %51, %cst_32 {dimension_numbers = #tpu.dot_dimension_numbers<[1], [0], [0], [1], [0, 0, 1, 1], [], []>} : vector<16x32xbf16>, vector<32x32xbf16>, vector<16x32xf32> -> vector<16x32xf32>
    %53 = arith.addf %48, %52 : vector<16x32xf32>
    %54 = vector.extract_strided_slice %14 {offsets = [9, 0], sizes = [16, 32], strides = [1, 1]} : vector<32x32xbf16> to vector<16x32xbf16>
    %c7 = arith.constant 7 : index
    %c0_33 = arith.constant 0 : index
    %c0_34 = arith.constant 0 : index
    %55 = vector.load %arg4[%c7, %c0_33, %c0_34] : memref<9x32x32xbf16, #tpu.memory_space<vmem>>, vector<1x32x32xbf16>
    %56 = vector.shape_cast %55 : vector<1x32x32xbf16> to vector<32x32xbf16>
    %cst_35 = arith.constant dense<0.000000e+00> : vector<16x32xf32>
    %57 = tpu.matmul %54, %56, %cst_35 {dimension_numbers = #tpu.dot_dimension_numbers<[1], [0], [0], [1], [0, 0, 1, 1], [], []>} : vector<16x32xbf16>, vector<32x32xbf16>, vector<16x32xf32> -> vector<16x32xf32>
    %58 = arith.addf %53, %57 : vector<16x32xf32>
    %59 = vector.extract_strided_slice %14 {offsets = [10, 0], sizes = [16, 32], strides = [1, 1]} : vector<32x32xbf16> to vector<16x32xbf16>
    %c8 = arith.constant 8 : index
    %c0_36 = arith.constant 0 : index
    %c0_37 = arith.constant 0 : index
    %60 = vector.load %arg4[%c8, %c0_36, %c0_37] : memref<9x32x32xbf16, #tpu.memory_space<vmem>>, vector<1x32x32xbf16>
    %61 = vector.shape_cast %60 : vector<1x32x32xbf16> to vector<32x32xbf16>
    %cst_38 = arith.constant dense<0.000000e+00> : vector<16x32xf32>
    %62 = tpu.matmul %59, %61, %cst_38 {dimension_numbers = #tpu.dot_dimension_numbers<[1], [0], [0], [1], [0, 0, 1, 1], [], []>} : vector<16x32xbf16>, vector<32x32xbf16>, vector<16x32xf32> -> vector<16x32xf32>
    %63 = arith.addf %58, %62 : vector<16x32xf32>
    %c2_39 = arith.constant 2 : index
    %c0_40 = arith.constant 0 : index
    %64 = vector.load %arg5[%c2_39, %c0_40] : memref<3x32xf32, #tpu.memory_space<vmem>>, vector<1x32xf32>
    %65 = vector.broadcast %64 : vector<1x32xf32> to vector<16x32xf32>
    %66 = arith.addf %63, %65 : vector<16x32xf32>
    %67 = arith.maximumf %39, %66 : vector<16x32xf32>
    %cst_41 = arith.constant 0.000000e+00 : f32
    %68 = vector.broadcast %cst_41 : f32 to vector<16x32xf32>
    %69 = arith.maximumf %67, %68 : vector<16x32xf32>
    %c0_42 = arith.constant 0 : index
    %c0_43 = arith.constant 0 : index
    %c0_44 = arith.constant 0 : index
    %70 = vector.load %arg6[%c0_42, %c0_43, %c0_44] : memref<1x16x32xf32, #tpu.memory_space<vmem>>, vector<1x16x32xf32>
    %71 = vector.shape_cast %70 : vector<1x16x32xf32> to vector<16x32xf32>
    %72 = vector.shape_cast %69 : vector<16x32xf32> to vector<1x16x32xf32>
    tpu.vector_store %arg6[%c0_42, %c0_43, %c0_44], %72 {strides = array<i32>} : memref<1x16x32xf32, #tpu.memory_space<vmem>>, vector<1x16x32xf32>,
    return
  }
  func.func @transform_0(%arg0: i32, %arg1: i32) -> (i32, i32, i32) {
    %c0_i32 = arith.constant 0 : i32
    %c0_i32_0 = arith.constant 0 : i32
    return %arg0, %arg1, %c0_i32 : i32, i32, i32
  }
  func.func @transform_1(%arg0: i32, %arg1: i32) -> (i32, i32, i32, i32) {
    %c0_i32 = arith.constant 0 : i32
    %c0_i32_0 = arith.constant 0 : i32
    %c0_i32_1 = arith.constant 0 : i32
    return %arg0, %arg1, %c0_i32, %c0_i32_0 : i32, i32, i32, i32
  }
  func.func @transform_2(%arg0: i32, %arg1: i32) -> (i32, i32, i32) {
    %c0_i32 = arith.constant 0 : i32
    %c0_i32_0 = arith.constant 0 : i32
    %c0_i32_1 = arith.constant 0 : i32
    %c0_i32_2 = arith.constant 0 : i32
    return %c0_i32, %c0_i32_0, %c0_i32_1 : i32, i32, i32
  }
  func.func @transform_3(%arg0: i32, %arg1: i32) -> (i32, i32) {
    %c0_i32 = arith.constant 0 : i32
    %c0_i32_0 = arith.constant 0 : i32
    %c0_i32_1 = arith.constant 0 : i32
    return %c0_i32, %c0_i32_0 : i32, i32
  }
  func.func @transform_4(%arg0: i32, %arg1: i32) -> (i32, i32, i32) {
    %c0_i32 = arith.constant 0 : i32
    %c0_i32_0 = arith.constant 0 : i32
    return %arg0, %arg1, %c0_i32 : i32, i32, i32
  }
}

</mosaic_0001>

<llo_original>
// kernel: tpu_custom_call.1
$region0: #{tpu_custom_call.1}
  #allocation0 [shape = 'u32[]', space=smem, size = 0x4, offset = 0x4, fixed_abs, tag = 'smem constant byte address 0x4 - core index']
  #allocation1 [shape = 'u32[144,128]{1,0:T(1,128)}', space=vmem, size = 0x12000, scoped, tag = 'internal scratch']
  %s0 = inlined_call_operand.hbm [shape: f32[2,16,32], index: 0, kind: input, shape index: {}]
  %s1 = inlined_call_operand.hbm [shape: f32[2,1,16,32], index: 1, kind: input, shape index: {}]
  %s2 = inlined_call_operand.hbm [shape: bf16[9,32,32], index: 2, kind: input, shape index: {}]
  %s3 = inlined_call_operand.vmem [shape: f32[3,32], index: 3, kind: input, shape index: {}]
  %s4 = inlined_call_operand.hbm [shape: f32[2,16,32], index: 4, kind: output, shape index: {}]
  %s5 = sld [smem:[#allocation0]]
  $region61: #{tpu_custom_call.1} parent=0
    _
  %s7 = ssub.s32 1, %s5
  %s8 = scalar_select 0, %s7, %s5
  $region1: #{tpu_custom_call.1} parent=0
    #allocation2 [shape = 'u8[16384]{0}', space=vmem, size = 0x4000, scoped, tag = 'input window, operand 0']
    #allocation3 [shape = 's32[2]{0}', space=sflag, size = 0x8, scoped, tag = 'scoped memory for tpu_custom_call.1']
    #allocation4 [shape = 's32[2]{0}', space=sflag, size = 0x8, scoped, tag = 'scoped memory for tpu_custom_call.1']
    #allocation5 [shape = 'u8[16384]{0}', space=vmem, size = 0x4000, scoped, tag = 'input window, operand 1']
    #allocation6 [shape = 's32[2]{0}', space=sflag, size = 0x8, scoped, tag = 'scoped memory for tpu_custom_call.1']
    #allocation7 [shape = 'u8[73728]{0}', space=vmem, size = 0x12000, scoped, tag = 'input window, operand 2, single buffered']
    #allocation8 [shape = 'u8[16384]{0}', space=vmem, size = 0x4000, scoped, tag = 'output window, operand 0']
    %9 = vsyncpa [#allocation3], 0
    %s10 = scalar_lea.sflag [#allocation3], 1
    %11 = vsyncpa %s10, 0
    %12 = vsyncpa [#allocation6], 0
    %s13 = scalar_lea.sflag [#allocation6], 1
    %14 = vsyncpa %s13, 0
    %15 = vsyncpa [#allocation4], 0
    %s16 = scalar_lea.sflag [#allocation4], 1
    %17 = vsyncpa %s16, 0
    loop: start=0, step=1, limit=4
    $region2: #{tpu_custom_call.1} parent=1 // loop_pre_header
      _
    $region3: #{tpu_custom_call.1} parent=1 // loop_header
      %s19 = sphi 0, %s23
      %p20 = scmp.ge.s32.totalorder %s19, 4
      %s26 = sphi 0, %s38
      %s27 = sphi 0, %s34
      %s28 = sphi 0, %s26
      %s29 = sphi 0, %s27
      %s30 = sphi 0, %s28
      %s31 = sphi 0, %s29
      %s43 = sphi 0, %s45
      %s46 = sphi 0, %s43
      %s47 = sphi 0, %s46
      %s63 = sphi 0, %s47
      %s71 = sphi 0, %s73
      %s74 = sphi 0, %s71
      %s75 = sphi 0, %s74
      %s91 = sphi 0, %s75
      %s95 = sphi 0, %s95
      %s97 = sphi 0, %s95
      %s98 = sphi 0, %s97
      %s112 = sphi 0, %s98
      %s116 = sphi 0, %s116
      %s118 = sphi 0, %s116
      %s119 = sphi 0, %s118
      %s133 = sphi 0, %s119
      %s141 = sphi 0, %s143
      %s144 = sphi 0, %s141
      %s145 = sphi 0, %s144
      %s161 = sphi 0, %s145
    $region4: #{tpu_custom_call.1} parent=1 // loop_header_branch
      %22 = sbr.rel (%p20) target = $region8
    $region5: #{tpu_custom_call.1} parent=1 // loop_body
      %s24 = ssub.s32 %s19, 1
      %s25 = ssub.s32 %s19, 2
      %s32 = sadd.s32 1, %s27
      %p33 = scmp.ge.s32.totalorder %s32, 1
      %s34 = scalar_select %p33, 0, %s32
      %s35 = sadd.s32 1, %s26
      %s36 = scalar_select %p33, %s35, %s26
      %p37 = scmp.ge.s32.totalorder %s36, 2
      %s38 = scalar_select %p37, 0, %s36
      %s39 = ssub.s32 %s26, %s38
      %s40 = ssub.s32 %s27, %s34
      %s41 = sor.u32 %s39, %s40
      %p42 = scmp.eq.s32.totalorder %s41, 0
      %s44 = sadd.s32 %s43, 1
      %s45 = scalar_select %p42, %s43, %s44
      %p48 = pneg %p42
      %p49 = scmp.eq.s32.totalorder %s19, 1
      %p50 = por %p48, %p49
      %p51 = scmp.ne.s32.totalorder %s43, %s46
      %p52 = scmp.eq.s32.totalorder %s19, 0
      %p53 = por %p51, %p52
      %p54 = scmp.ne.s32.totalorder %s43, %s46
      %p55 = scmp.eq.s32.totalorder %s24, 1
      %p56 = por %p54, %p55
      %p57 = scmp.ne.s32.totalorder %s46, %s47
      %p58 = scmp.eq.s32.totalorder %s24, 0
      %p59 = por %p57, %p58
      %p60 = scmp.ne.s32.totalorder %s46, %s47
      %p61 = scmp.eq.s32.totalorder %s25, 1
      %p62 = por %p60, %p61
      %p64 = scmp.ne.s32.totalorder %s47, %s63
      %p65 = scmp.eq.s32.totalorder %s25, 0
      %p66 = por %p64, %p65
      %s67 = ssub.s32 %s26, %s38
      %s68 = ssub.s32 %s27, %s34
      %s69 = sor.u32 %s67, %s68
      %p70 = scmp.eq.s32.totalorder %s69, 0
      %s72 = sadd.s32 %s71, 1
      %s73 = scalar_select %p70, %s71, %s72
      %p76 = pneg %p70
      %p77 = scmp.eq.s32.totalorder %s19, 1
      %p78 = por %p76, %p77
      %p79 = scmp.ne.s32.totalorder %s71, %s74
      %p80 = scmp.eq.s32.totalorder %s19, 0
      %p81 = por %p79, %p80
      %p82 = scmp.ne.s32.totalorder %s71, %s74
      %p83 = scmp.eq.s32.totalorder %s24, 1
      %p84 = por %p82, %p83
      %p85 = scmp.ne.s32.totalorder %s74, %s75
      %p86 = scmp.eq.s32.totalorder %s24, 0
      %p87 = por %p85, %p86
      %p88 = scmp.ne.s32.totalorder %s74, %s75
      %p89 = scmp.eq.s32.totalorder %s25, 1
      %p90 = por %p88, %p89
      %p92 = scmp.ne.s32.totalorder %s75, %s91
      %p93 = scmp.eq.s32.totalorder %s25, 0
      %p94 = por %p92, %p93
      %s96 = sadd.s32 %s95, 1
      %p99 = scmp.eq.s32.totalorder %s19, 1
      %p100 = scmp.ne.s32.totalorder %s95, %s97
      %p101 = scmp.eq.s32.totalorder %s19, 0
      %p102 = por %p100, %p101
      %p103 = scmp.ne.s32.totalorder %s95, %s97
      %p104 = scmp.eq.s32.totalorder %s24, 1
      %p105 = por %p103, %p104
      %p106 = scmp.ne.s32.totalorder %s97, %s98
      %p107 = scmp.eq.s32.totalorder %s24, 0
      %p108 = por %p106, %p107
      %p109 = scmp.ne.s32.totalorder %s97, %s98
      %p110 = scmp.eq.s32.totalorder %s25, 1
      %p111 = por %p109, %p110
      %p113 = scmp.ne.s32.totalorder %s98, %s112
      %p114 = scmp.eq.s32.totalorder %s25, 0
      %p115 = por %p113, %p114
      %s117 = sadd.s32 %s116, 1
      %p120 = scmp.eq.s32.totalorder %s19, 1
      %p121 = scmp.ne.s32.totalorder %s116, %s118
      %p122 = scmp.eq.s32.totalorder %s19, 0
      %p123 = por %p121, %p122
      %p124 = scmp.ne.s32.totalorder %s116, %s118
      %p125 = scmp.eq.s32.totalorder %s24, 1
      %p126 = por %p124, %p125
      %p127 = scmp.ne.s32.totalorder %s118, %s119
      %p128 = scmp.eq.s32.totalorder %s24, 0
      %p129 = por %p127, %p128
      %p130 = scmp.ne.s32.totalorder %s118, %s119
      %p131 = scmp.eq.s32.totalorder %s25, 1
      %p132 = por %p130, %p131
      %p134 = scmp.ne.s32.totalorder %s119, %s133
      %p135 = scmp.eq.s32.totalorder %s25, 0
      %p136 = por %p134, %p135
      %s137 = ssub.s32 %s26, %s38
      %s138 = ssub.s32 %s27, %s34
      %s139 = sor.u32 %s137, %s138
      %p140 = scmp.eq.s32.totalorder %s139, 0
      %s142 = sadd.s32 %s141, 1
      %s143 = scalar_select %p140, %s141, %s142
      %p146 = pneg %p140
      %p147 = scmp.eq.s32.totalorder %s19, 1
      %p148 = por %p146, %p147
      %p149 = scmp.ne.s32.totalorder %s141, %s144
      %p150 = scmp.eq.s32.totalorder %s19, 0
      %p151 = por %p149, %p150
      %p152 = scmp.ne.s32.totalorder %s141, %s144
      %p153 = scmp.eq.s32.totalorder %s24, 1
      %p154 = por %p152, %p153
      %p155 = scmp.ne.s32.totalorder %s144, %s145
      %p156 = scmp.eq.s32.totalorder %s24, 0
      %p157 = por %p155, %p156
      %p158 = scmp.ne.s32.totalorder %s144, %s145
      %p159 = scmp.eq.s32.totalorder %s25, 1
      %p160 = por %p158, %p159
      %p162 = scmp.ne.s32.totalorder %s145, %s161
      %p163 = scmp.eq.s32.totalorder %s25, 0
      %p164 = por %p162, %p163
      %p165 = scmp.le.s32.totalorder 1, %s19
      %p166 = scmp.lt.s32.totalorder %s19, 3
      %p167 = pnand %p165, %p166
      %p168 = pneg %p167
      // Predicated region
      $region9: #{tpu_custom_call.1} parent=5 // pred_check
        _
      $region10: #{tpu_custom_call.1} parent=5 // pred_check_branch
        %170 = sbr.rel (%p167) target = $region12
      $region11: #{tpu_custom_call.1} parent=5 // pred_region
        %s171 = ssub.s32 %s19, 1
        // Predicated region
        $region13: #{tpu_custom_call.1} parent=11 // pred_check
          %p172 = pneg %p108
        $region14: #{tpu_custom_call.1} parent=11 // pred_check_branch
          %174 = sbr.rel (%p172) target = $region16
        $region15: #{tpu_custom_call.1} parent=11 // pred_region
          %s176 = ssub.s32 2304, 2304
          %177 = vsyncadd [#allocation6], %s176
          %s178 = sshll.u32 [#allocation7], 4
          %s179 = int_to_ptr.vmem [resolvable:$true] %s178
          %184 = dma.hbm_to_vmem [thread:$0]  %s2, 2304, %s179, [#allocation6], 64, 64, 4
        $region16: #{tpu_custom_call.1} parent=11 // pred_fallthru
          _
        // Predicated region
        $region17: #{tpu_custom_call.1} parent=11 // pred_check
          %p185 = pneg %p129
        $region18: #{tpu_custom_call.1} parent=11 // pred_check_branch
          %187 = sbr.rel (%p185) target = $region20
        $region19: #{tpu_custom_call.1} parent=11 // pred_region
          _
        $region20: #{tpu_custom_call.1} parent=11 // pred_fallthru
          _
      $region12: #{tpu_custom_call.1} parent=5 // pred_fallthru
        _
      %p188 = scmp.lt.s32.totalorder %s19, 2
      // Predicated region
      $region21: #{tpu_custom_call.1} parent=5 // pred_check
        %p189 = pneg %p188
      $region22: #{tpu_custom_call.1} parent=5 // pred_check_branch
        %191 = sbr.rel (%p189) target = $region24
      $region23: #{tpu_custom_call.1} parent=5 // pred_region
        // Predicated region
        $region25: #{tpu_custom_call.1} parent=23 // pred_check
          %p192 = pneg %p53
        $region26: #{tpu_custom_call.1} parent=23 // pred_check_branch
          %194 = sbr.rel (%p192) target = $region28
        $region27: #{tpu_custom_call.1} parent=23 // pred_region
          %s195 = sand.u32 %s43, 1
          %s196 = scalar_lea.sflag [#allocation3], %s195
          %s197 = sand.u32 %s43, 1
          %s198 = smul.addr %s197, 16
          %s199 = scalar_lea.vmem [#allocation2], %s198
          %s200 = smul.u32 2, %s27
          %s202 = ssub.s32 256, 256
          %203 = vsyncadd %s196, %s202
          %s204 = smul.addr %s26, 2
          %s205 = sadd.s32 %s200, %s204
          %s206 = smul.addr %s205, 128
          %s207 = scalar_lea.hbm %s0, %s206
          %s208 = sshll.u32 %s199, 4
          %s209 = int_to_ptr.vmem [resolvable:$true] %s208
          %214 = dma.hbm_to_vmem [thread:$0]  %s207, 256, %s209, %s196, 128, 128, 8
        $region28: #{tpu_custom_call.1} parent=23 // pred_fallthru
          _
        // Predicated region
        $region29: #{tpu_custom_call.1} parent=23 // pred_check
          %p215 = pneg %p81
        $region30: #{tpu_custom_call.1} parent=23 // pred_check_branch
          %217 = sbr.rel (%p215) target = $region32
        $region31: #{tpu_custom_call.1} parent=23 // pred_region
          %s218 = sand.u32 %s19, 1
          %s219 = scalar_lea.sflag [#allocation6], %s218
          %s220 = sand.u32 %s71, 1
          %s221 = smul.addr %s220, 16
          %s222 = scalar_lea.vmem [#allocation5], %s221
          %s224 = ssub.s32 256, 256
          %225 = vsyncadd %s219, %s224
          %s226 = smul.addr %s27, 2
          %s227 = smul.addr %s26, 2
          %s228 = sadd.s32 %s226, %s227
          %s229 = smul.addr %s228, 128
          %s230 = scalar_lea.hbm %s1, %s229
          %s231 = sshll.u32 %s222, 4
          %s232 = int_to_ptr.vmem [resolvable:$true] %s231
          %237 = dma.hbm_to_vmem [thread:$0]  %s230, 256, %s232, %s219, 128, 128, 8
        $region32: #{tpu_custom_call.1} parent=23 // pred_fallthru
          _
      $region24: #{tpu_custom_call.1} parent=5 // pred_fallthru
        _
      %p238 = scmp.le.s32.totalorder 1, %s19
      %p239 = scmp.lt.s32.totalorder %s19, 3
      %p240 = pnand %p238, %p239
      %p241 = pneg %p240
      // Predicated region
      $region33: #{tpu_custom_call.1} parent=5 // pred_check
        _
      $region34: #{tpu_custom_call.1} parent=5 // pred_check_branch
        %243 = sbr.rel (%p240) target = $region36
      $region35: #{tpu_custom_call.1} parent=5 // pred_region
        %s244 = ssub.s32 %s19, 1
        %s245 = sand.u32 %s46, 1
        %s246 = scalar_lea.sflag [#allocation3], %s245
        %s247 = sand.u32 %s46, 1
        %s248 = smul.addr %s247, 16
        %s249 = scalar_lea.vmem [#allocation2], %s248
        // Predicated region
        $region37: #{tpu_custom_call.1} parent=35 // pred_check
          %p250 = pneg %p59
        $region38: #{tpu_custom_call.1} parent=35 // pred_check_branch
          %252 = sbr.rel (%p250) target = $region40
        $region39: #{tpu_custom_call.1} parent=35 // pred_region
          %253 = dma.done %s246, 256
        $region40: #{tpu_custom_call.1} parent=35 // pred_fallthru
          _
        %s254 = sand.u32 %s24, 1
        %s255 = scalar_lea.sflag [#allocation6], %s254
        %s256 = sand.u32 %s74, 1
        %s257 = smul.addr %s256, 16
        %s258 = scalar_lea.vmem [#allocation5], %s257
        // Predicated region
        $region41: #{tpu_custom_call.1} parent=35 // pred_check
          %p259 = pneg %p87
        $region42: #{tpu_custom_call.1} parent=35 // pred_check_branch
          %261 = sbr.rel (%p259) target = $region44
        $region43: #{tpu_custom_call.1} parent=35 // pred_region
          %262 = dma.done %s255, 256
        $region44: #{tpu_custom_call.1} parent=35 // pred_fallthru
          _
        // Predicated region
        $region45: #{tpu_custom_call.1} parent=35 // pred_check
          %p263 = pneg %p108
        $region46: #{tpu_custom_call.1} parent=35 // pred_check_branch
          %265 = sbr.rel (%p263) target = $region48
        $region47: #{tpu_custom_call.1} parent=35 // pred_region
          %266 = dma.done [#allocation6], 2304
        $region48: #{tpu_custom_call.1} parent=35 // pred_fallthru
          _
        %s267 = sand.u32 %s46, 1
        %s268 = scalar_lea.sflag [#allocation3], %s267
        %s269 = sand.u32 %s46, 1
        %s270 = smul.addr %s269, 16
        %s271 = scalar_lea.vmem [#allocation2], %s270
        %p272 = pneg %p59
        %p273 = pneg %p56
        %s274 = sand.u32 %s24, 1
        %s275 = scalar_lea.sflag [#allocation6], %s274
        %s276 = sand.u32 %s74, 1
        %s277 = smul.addr %s276, 16
        %s278 = scalar_lea.vmem [#allocation5], %s277
        %p279 = pneg %p87
        %p280 = pneg %p84
        %p281 = pneg %p108
        %p282 = pneg %p105
        %p283 = pneg %p129
        %p284 = pneg %p126
        %p285 = pneg %p157
        %p286 = pneg %p154
        %s287 = sand.u32 %s144, 1
        %s288 = scalar_lea.sflag [#allocation4], %s287
        %s289 = sand.u32 %s144, 1
        %s290 = smul.addr %s289, 16
        %s291 = scalar_lea.vmem [#allocation8], %s290
        %s292 = smul.u32 2, %s29
        %s293 = smul.u32 2, %s29
        %v295 = vld [vmem:[%s249] sm:$0xff]
        %v296 = vld [vmem:[%s249 + $0x8] sm:$0xff]
        %v297 = vlaneseq
        %v298 = vshrl.u32 %v297, 7
        %v299 = vadd.s32 %v298, 8
        %s300 = smul.u32 %s29, 16
        %s301 = ssub.s32 16, %s300
        %v302 = vstv %s301
        %vm303 = vcmp.lt.s32.totalorder %v298, %v302
        %vm304 = vcmp.lt.s32.totalorder %v299, %v302
        %v305 = vsel %vm303, %v295, 0.0
        %v306 = vsel %vm304, %v296, 0.0
        %v307 = vld [vmem:[%s258] sm:$0xff]
        %v308 = vld [vmem:[%s258 + $0x8] sm:$0xff]
        %v309 = vpack.c.bf16 %v305, %v307
        %v310 = vpack.c.bf16 %v308, %v306
        %v311 = vld [vmem:[#allocation7] sm:$0xf]
        %v312 = vld [vmem:[#allocation7 + $0x4] sm:$0xf]
        %v313 = vld [vmem:[#allocation7 + $0x8] sm:$0xf]
        %v314 = vld [vmem:[#allocation7 + $0xc] sm:$0xf]
        %v315 = vld [vmem:[%s3] sm:$0x1]
        %v316 = vlaneseq
        %v317 = vshrl.u32 %v316, 7
        %v318 = vsub.s32 0, %v317
        %v319 = vrot.slane %v315, %v318
        %vm322 = vcmask 1043456
        %v323 = vrot.slane %v309, 4
        %v324 = vrot.slane %v310, 4
        %v325 = vsel %vm322, %v323, %v324
        %v330 = vunpack.c.l.b16 %v311
        %v331 = vunpack.c.l.b16 %v312
        %v332 = vunpack.c.l.b16 %v313
        %v333 = vunpack.c.l.b16 %v314
        %v334 = vpack.c.b16 %v331, %v330
        %v335 = vpack.c.b16 %v333, %v332
        %vm338 = vcmask 261120
        %v340 = vsel %vm338, %v325, 0
        %342 = vmatprep.subr.bf16.mxu0 0
        %343 = vmatpush1.bf16.msra.mxu0 0
        %344 = vmatprep.subr.bf16.mxu0 0
        %345 = vmatpush1.bf16.msra.mxu0 0
        %346 = vmatprep.subr.bf16.mxu0 0
        %347 = vmatpush1.bf16.msra.mxu0 0
        %348 = vmatprep.subr.bf16.mxu0 0
        %349 = vmatpush1.bf16.msra.mxu0 0
        %350 = vmatprep.subr.bf16.mxu0 0
        %351 = vmatpush1.bf16.msra.mxu0 0
        %352 = vmatprep.subr.bf16.mxu0 0
        %353 = vmatpush1.bf16.msra.mxu0 0
        %354 = vmatprep.subr.bf16.mxu0 0
        %355 = vmatpush1.bf16.msra.mxu0 %v335
        %356 = vmatprep.subr.bf16.mxu0 0
        %357 = vmatpush1.bf16.msra.mxu0 %v334
        %358 = vmatprep.subr.bf16.mxu0 0
        %359 = vmatpush2.bf16.msra.mxu0 0
        %360 = vmatprep.subr.bf16.mxu0 0
        %361 = vmatpush2.bf16.msra.mxu0 0
        %362 = vmatprep.subr.bf16.mxu0 0
        %363 = vmatpush2.bf16.msra.mxu0 0
        %364 = vmatprep.subr.bf16.mxu0 0
        %365 = vmatpush2.bf16.msra.mxu0 0
        %366 = vmatprep.subr.bf16.mxu0 0
        %367 = vmatpush2.bf16.msra.mxu0 0
        %368 = vmatprep.subr.bf16.mxu0 0
        %369 = vmatpush2.bf16.msra.mxu0 0
        %370 = vmatprep.subr.bf16.mxu0 0
        %371 = vmatpush2.bf16.msra.mxu0 0
        %372 = vmatprep.subr.bf16.mxu0 0
        %373 = vmatpush2.bf16.msra.mxu0 0
        %374 = vmatprep.mubr.bf16.mxu0 0
        %375 = vmatmul.mubr.bf16.gmra.mxu0 %v340
        %v376 = vpop.f32.mrf.mxu0
        %v377 = vadd.f32 %v319, %v376
        %v378 = vpop.f32.mrf.mxu0
        %v379 = vpop.f32.mrf.mxu0
        %v380 = vadd.f32 %v319, %v379
        %v381 = vpop.f32.mrf.mxu0
        %382 = vdwg.mxu0
        %s383 = scalar_lea.vmem [#allocation7], 16
        %v384 = vld [vmem:[%s383] sm:$0xf]
        %v385 = vld [vmem:[%s383 + $0x4] sm:$0xf]
        %v386 = vld [vmem:[%s383 + $0x8] sm:$0xf]
        %v387 = vld [vmem:[%s383 + $0xc] sm:$0xf]
        %s388 = scalar_lea.vmem [#allocation7], 32
        %v389 = vld [vmem:[%s388] sm:$0xf]
        %v390 = vld [vmem:[%s388 + $0x4] sm:$0xf]
        %v391 = vld [vmem:[%s388 + $0x8] sm:$0xf]
        %v392 = vld [vmem:[%s388 + $0xc] sm:$0xf]
        %v397 = vunpack.c.l.b16 %v389
        %v398 = vunpack.c.l.b16 %v390
        %v399 = vunpack.c.l.b16 %v391
        %v400 = vunpack.c.l.b16 %v392
        %v401 = vpack.c.b16 %v398, %v397
        %v402 = vpack.c.b16 %v400, %v399
        %405 = vmatprep.subr.bf16.mxu0 0
        %406 = vmatpush1.bf16.msra.mxu0 0
        %407 = vmatprep.subr.bf16.mxu0 0
        %408 = vmatpush1.bf16.msra.mxu0 0
        %409 = vmatprep.subr.bf16.mxu0 0
        %410 = vmatpush1.bf16.msra.mxu0 0
        %411 = vmatprep.subr.bf16.mxu0 0
        %412 = vmatpush1.bf16.msra.mxu0 0
        %413 = vmatprep.subr.bf16.mxu0 0
        %414 = vmatpush1.bf16.msra.mxu0 0
        %415 = vmatprep.subr.bf16.mxu0 0
        %416 = vmatpush1.bf16.msra.mxu0 0
        %417 = vmatprep.subr.bf16.mxu0 0
        %418 = vmatpush1.bf16.msra.mxu0 %v402
        %419 = vmatprep.subr.bf16.mxu0 0
        %420 = vmatpush1.bf16.msra.mxu0 %v401
        %421 = vmatprep.subr.bf16.mxu0 0
        %422 = vmatpush2.bf16.msra.mxu0 0
        %423 = vmatprep.subr.bf16.mxu0 0
        %424 = vmatpush2.bf16.msra.mxu0 0
        %425 = vmatprep.subr.bf16.mxu0 0
        %426 = vmatpush2.bf16.msra.mxu0 0
        %427 = vmatprep.subr.bf16.mxu0 0
        %428 = vmatpush2.bf16.msra.mxu0 0
        %429 = vmatprep.subr.bf16.mxu0 0
        %430 = vmatpush2.bf16.msra.mxu0 0
        %431 = vmatprep.subr.bf16.mxu0 0
        %432 = vmatpush2.bf16.msra.mxu0 0
        %433 = vmatprep.subr.bf16.mxu0 0
        %434 = vmatpush2.bf16.msra.mxu0 0
        %435 = vmatprep.subr.bf16.mxu0 0
        %436 = vmatpush2.bf16.msra.mxu0 0
        %437 = vmatprep.mubr.bf16.mxu0 0
        %438 = vmatmul.mubr.bf16.gmra.mxu0 %v340
        %v439 = vpop.f32.mrf.mxu0
        %v440 = vadd.f32 0.0, %v439
        %v441 = vpop.f32.mrf.mxu0
        %v442 = vpop.f32.mrf.mxu0
        %v443 = vadd.f32 0.0, %v442
        %v444 = vpop.f32.mrf.mxu0
        %445 = vdwg.mxu0
        %vm446 = vsmask.f32 4352
        %v448 = vshrl.u32 %v309, 16
        %v450 = vrot.slane %v448, 3
        %v451 = vshll.u32 %v309, 16
        %v453 = vrot.slane %v451, 4
        %v454 = vor.u32 %v450, %v453
        %v456 = vshrl.u32 %v310, 16
        %v458 = vrot.slane %v456, 3
        %v459 = vshll.u32 %v310, 16
        %v461 = vrot.slane %v459, 4
        %v462 = vor.u32 %v458, %v461
        %v463 = vsel %vm446, %v454, %v462
        %v468 = vunpack.c.l.b16 %v384
        %v469 = vunpack.c.l.b16 %v385
        %v470 = vunpack.c.l.b16 %v386
        %v471 = vunpack.c.l.b16 %v387
        %v472 = vpack.c.b16 %v469, %v468
        %v473 = vpack.c.b16 %v471, %v470
        %v477 = vsel %vm338, %v463, 0
        %479 = vmatprep.subr.bf16.mxu0 0
        %480 = vmatpush1.bf16.msra.mxu0 0
        %481 = vmatprep.subr.bf16.mxu0 0
        %482 = vmatpush1.bf16.msra.mxu0 0
        %483 = vmatprep.subr.bf16.mxu0 0
        %484 = vmatpush1.bf16.msra.mxu0 0
        %485 = vmatprep.subr.bf16.mxu0 0
        %486 = vmatpush1.bf16.msra.mxu0 0
        %487 = vmatprep.subr.bf16.mxu0 0
        %488 = vmatpush1.bf16.msra.mxu0 0
        %489 = vmatprep.subr.bf16.mxu0 0
        %490 = vmatpush1.bf16.msra.mxu0 0
        %491 = vmatprep.subr.bf16.mxu0 0
        %492 = vmatpush1.bf16.msra.mxu0 %v473
        %493 = vmatprep.subr.bf16.mxu0 0
        %494 = vmatpush1.bf16.msra.mxu0 %v472
        %495 = vmatprep.subr.bf16.mxu0 0
        %496 = vmatpush2.bf16.msra.mxu0 0
        %497 = vmatprep.subr.bf16.mxu0 0
        %498 = vmatpush2.bf16.msra.mxu0 0
        %499 = vmatprep.subr.bf16.mxu0 0
        %500 = vmatpush2.bf16.msra.mxu0 0
        %501 = vmatprep.subr.bf16.mxu0 0
        %502 = vmatpush2.bf16.msra.mxu0 0
        %503 = vmatprep.subr.bf16.mxu0 0
        %504 = vmatpush2.bf16.msra.mxu0 0
        %505 = vmatprep.subr.bf16.mxu0 0
        %506 = vmatpush2.bf16.msra.mxu0 0
        %507 = vmatprep.subr.bf16.mxu0 0
        %508 = vmatpush2.bf16.msra.mxu0 0
        %509 = vmatprep.subr.bf16.mxu0 0
        %510 = vmatpush2.bf16.msra.mxu0 0
        %511 = vmatprep.mubr.bf16.mxu0 0
        %512 = vmatmul.mubr.bf16.gmra.mxu0 %v477
        %v513 = vpop.f32.mrf.mxu0
        %v514 = vadd.f32 %v440, %v513
        %v515 = vpop.f32.mrf.mxu0
        %v516 = vpop.f32.mrf.mxu0
        %v517 = vadd.f32 %v443, %v516
        %v518 = vpop.f32.mrf.mxu0
        %519 = vdwg.mxu0
        %s520 = scalar_lea.vmem [#allocation7], 48
        %v521 = vld [vmem:[%s520] sm:$0xf]
        %v522 = vld [vmem:[%s520 + $0x4] sm:$0xf]
        %v523 = vld [vmem:[%s520 + $0x8] sm:$0xf]
        %v524 = vld [vmem:[%s520 + $0xc] sm:$0xf]
        %vm525 = vsmask.f32 3328
        %v526 = vrot.slane %v448, 4
        %v527 = vrot.slane %v451, 5
        %v528 = vor.u32 %v526, %v527
        %v529 = vrot.slane %v456, 4
        %v530 = vrot.slane %v459, 5
        %v531 = vor.u32 %v529, %v530
        %v532 = vsel %vm525, %v528, %v531
        %v537 = vunpack.c.l.b16 %v521
        %v538 = vunpack.c.l.b16 %v522
        %v539 = vunpack.c.l.b16 %v523
        %v540 = vunpack.c.l.b16 %v524
        %v541 = vpack.c.b16 %v538, %v537
        %v542 = vpack.c.b16 %v540, %v539
        %v546 = vsel %vm338, %v532, 0
        %548 = vmatprep.subr.bf16.mxu0 0
        %549 = vmatpush1.bf16.msra.mxu0 0
        %550 = vmatprep.subr.bf16.mxu0 0
        %551 = vmatpush1.bf16.msra.mxu0 0
        %552 = vmatprep.subr.bf16.mxu0 0
        %553 = vmatpush1.bf16.msra.mxu0 0
        %554 = vmatprep.subr.bf16.mxu0 0
        %555 = vmatpush1.bf16.msra.mxu0 0
        %556 = vmatprep.subr.bf16.mxu0 0
        %557 = vmatpush1.bf16.msra.mxu0 0
        %558 = vmatprep.subr.bf16.mxu0 0
        %559 = vmatpush1.bf16.msra.mxu0 0
        %560 = vmatprep.subr.bf16.mxu0 0
        %561 = vmatpush1.bf16.msra.mxu0 %v542
        %562 = vmatprep.subr.bf16.mxu0 0
        %563 = vmatpush1.bf16.msra.mxu0 %v541
        %564 = vmatprep.subr.bf16.mxu0 0
        %565 = vmatpush2.bf16.msra.mxu0 0
        %566 = vmatprep.subr.bf16.mxu0 0
        %567 = vmatpush2.bf16.msra.mxu0 0
        %568 = vmatprep.subr.bf16.mxu0 0
        %569 = vmatpush2.bf16.msra.mxu0 0
        %570 = vmatprep.subr.bf16.mxu0 0
        %571 = vmatpush2.bf16.msra.mxu0 0
        %572 = vmatprep.subr.bf16.mxu0 0
        %573 = vmatpush2.bf16.msra.mxu0 0
        %574 = vmatprep.subr.bf16.mxu0 0
        %575 = vmatpush2.bf16.msra.mxu0 0
        %576 = vmatprep.subr.bf16.mxu0 0
        %577 = vmatpush2.bf16.msra.mxu0 0
        %578 = vmatprep.subr.bf16.mxu0 0
        %579 = vmatpush2.bf16.msra.mxu0 0
        %580 = vmatprep.mubr.bf16.mxu0 0
        %581 = vmatmul.mubr.bf16.gmra.mxu0 %v546
        %v582 = vpop.f32.mrf.mxu0
        %v583 = vadd.f32 0.0, %v582
        %v584 = vpop.f32.mrf.mxu0
        %v585 = vpop.f32.mrf.mxu0
        %v586 = vadd.f32 0.0, %v585
        %v587 = vpop.f32.mrf.mxu0
        %588 = vdwg.mxu0
        %v589 = vadd.f32 %v514, %v583
        %v590 = vadd.f32 %v517, %v586
        %v591 = vld [vmem:[%s3 + $0x1] sm:$0x1]
        %v592 = vlaneseq
        %v593 = vshrl.u32 %v592, 7
        %v594 = vsub.s32 0, %v593
        %v595 = vrot.slane %v591, %v594
        %v596 = vadd.f32 %v589, %v595
        %v597 = vadd.f32 %v590, %v595
        %v598 = vmax.f32 %v377, %v596
        %v599 = vmax.f32 %v380, %v597
        %s600 = scalar_lea.vmem [#allocation7], 64
        %v601 = vld [vmem:[%s600] sm:$0xf]
        %v602 = vld [vmem:[%s600 + $0x4] sm:$0xf]
        %v603 = vld [vmem:[%s600 + $0x8] sm:$0xf]
        %v604 = vld [vmem:[%s600 + $0xc] sm:$0xf]
        %s605 = scalar_lea.vmem [#allocation7], 80
        %v606 = vld [vmem:[%s605] sm:$0xf]
        %v607 = vld [vmem:[%s605 + $0x4] sm:$0xf]
        %v608 = vld [vmem:[%s605 + $0x8] sm:$0xf]
        %v609 = vld [vmem:[%s605 + $0xc] sm:$0xf]
        %v614 = vunpack.c.l.b16 %v606
        %v615 = vunpack.c.l.b16 %v607
        %v616 = vunpack.c.l.b16 %v608
        %v617 = vunpack.c.l.b16 %v609
        %v618 = vpack.c.b16 %v615, %v614
        %v619 = vpack.c.b16 %v617, %v616
        %622 = vmatprep.subr.bf16.mxu0 0
        %623 = vmatpush1.bf16.msra.mxu0 0
        %624 = vmatprep.subr.bf16.mxu0 0
        %625 = vmatpush1.bf16.msra.mxu0 0
        %626 = vmatprep.subr.bf16.mxu0 0
        %627 = vmatpush1.bf16.msra.mxu0 0
        %628 = vmatprep.subr.bf16.mxu0 0
        %629 = vmatpush1.bf16.msra.mxu0 0
        %630 = vmatprep.subr.bf16.mxu0 0
        %631 = vmatpush1.bf16.msra.mxu0 0
        %632 = vmatprep.subr.bf16.mxu0 0
        %633 = vmatpush1.bf16.msra.mxu0 0
        %634 = vmatprep.subr.bf16.mxu0 0
        %635 = vmatpush1.bf16.msra.mxu0 %v619
        %636 = vmatprep.subr.bf16.mxu0 0
        %637 = vmatpush1.bf16.msra.mxu0 %v618
        %638 = vmatprep.subr.bf16.mxu0 0
        %639 = vmatpush2.bf16.msra.mxu0 0
        %640 = vmatprep.subr.bf16.mxu0 0
        %641 = vmatpush2.bf16.msra.mxu0 0
        %642 = vmatprep.subr.bf16.mxu0 0
        %643 = vmatpush2.bf16.msra.mxu0 0
        %644 = vmatprep.subr.bf16.mxu0 0
        %645 = vmatpush2.bf16.msra.mxu0 0
        %646 = vmatprep.subr.bf16.mxu0 0
        %647 = vmatpush2.bf16.msra.mxu0 0
        %648 = vmatprep.subr.bf16.mxu0 0
        %649 = vmatpush2.bf16.msra.mxu0 0
        %650 = vmatprep.subr.bf16.mxu0 0
        %651 = vmatpush2.bf16.msra.mxu0 0
        %652 = vmatprep.subr.bf16.mxu0 0
        %653 = vmatpush2.bf16.msra.mxu0 0
        %654 = vmatprep.mubr.bf16.mxu0 0
        %655 = vmatmul.mubr.bf16.gmra.mxu0 %v477
        %v656 = vpop.f32.mrf.mxu0
        %v657 = vadd.f32 0.0, %v656
        %v658 = vpop.f32.mrf.mxu0
        %v659 = vpop.f32.mrf.mxu0
        %v660 = vadd.f32 0.0, %v659
        %v661 = vpop.f32.mrf.mxu0
        %662 = vdwg.mxu0
        %vm663 = vcmask 1044480
        %v664 = vrot.slane %v309, 3
        %v665 = vrot.slane %v310, 3
        %v666 = vsel %vm663, %v664, %v665
        %v671 = vunpack.c.l.b16 %v601
        %v672 = vunpack.c.l.b16 %v602
        %v673 = vunpack.c.l.b16 %v603
        %v674 = vunpack.c.l.b16 %v604
        %v675 = vpack.c.b16 %v672, %v671
        %v676 = vpack.c.b16 %v674, %v673
        %v680 = vsel %vm338, %v666, 0
        %682 = vmatprep.subr.bf16.mxu0 0
        %683 = vmatpush1.bf16.msra.mxu0 0
        %684 = vmatprep.subr.bf16.mxu0 0
        %685 = vmatpush1.bf16.msra.mxu0 0
        %686 = vmatprep.subr.bf16.mxu0 0
        %687 = vmatpush1.bf16.msra.mxu0 0
        %688 = vmatprep.subr.bf16.mxu0 0
        %689 = vmatpush1.bf16.msra.mxu0 0
        %690 = vmatprep.subr.bf16.mxu0 0
        %691 = vmatpush1.bf16.msra.mxu0 0
        %692 = vmatprep.subr.bf16.mxu0 0
        %693 = vmatpush1.bf16.msra.mxu0 0
        %694 = vmatprep.subr.bf16.mxu0 0
        %695 = vmatpush1.bf16.msra.mxu0 %v676
        %696 = vmatprep.subr.bf16.mxu0 0
        %697 = vmatpush1.bf16.msra.mxu0 %v675
        %698 = vmatprep.subr.bf16.mxu0 0
        %699 = vmatpush2.bf16.msra.mxu0 0
        %700 = vmatprep.subr.bf16.mxu0 0
        %701 = vmatpush2.bf16.msra.mxu0 0
        %702 = vmatprep.subr.bf16.mxu0 0
        %703 = vmatpush2.bf16.msra.mxu0 0
        %704 = vmatprep.subr.bf16.mxu0 0
        %705 = vmatpush2.bf16.msra.mxu0 0
        %706 = vmatprep.subr.bf16.mxu0 0
        %707 = vmatpush2.bf16.msra.mxu0 0
        %708 = vmatprep.subr.bf16.mxu0 0
        %709 = vmatpush2.bf16.msra.mxu0 0
        %710 = vmatprep.subr.bf16.mxu0 0
        %711 = vmatpush2.bf16.msra.mxu0 0
        %712 = vmatprep.subr.bf16.mxu0 0
        %713 = vmatpush2.bf16.msra.mxu0 0
        %714 = vmatprep.mubr.bf16.mxu0 0
        %715 = vmatmul.mubr.bf16.gmra.mxu0 %v680
        %v716 = vpop.f32.mrf.mxu0
        %v717 = vadd.f32 %v657, %v716
        %v718 = vpop.f32.mrf.mxu0
        %v719 = vpop.f32.mrf.mxu0
        %v720 = vadd.f32 %v660, %v719
        %v721 = vpop.f32.mrf.mxu0
        %722 = vdwg.mxu0
        %s723 = scalar_lea.vmem [#allocation7], 96
        %v724 = vld [vmem:[%s723] sm:$0xf]
        %v725 = vld [vmem:[%s723 + $0x4] sm:$0xf]
        %v726 = vld [vmem:[%s723 + $0x8] sm:$0xf]
        %v727 = vld [vmem:[%s723 + $0xc] sm:$0xf]
        %v732 = vunpack.c.l.b16 %v724
        %v733 = vunpack.c.l.b16 %v725
        %v734 = vunpack.c.l.b16 %v726
        %v735 = vunpack.c.l.b16 %v727
        %v736 = vpack.c.b16 %v733, %v732
        %v737 = vpack.c.b16 %v735, %v734
        %740 = vmatprep.subr.bf16.mxu0 0
        %741 = vmatpush1.bf16.msra.mxu0 0
        %742 = vmatprep.subr.bf16.mxu0 0
        %743 = vmatpush1.bf16.msra.mxu0 0
        %744 = vmatprep.subr.bf16.mxu0 0
        %745 = vmatpush1.bf16.msra.mxu0 0
        %746 = vmatprep.subr.bf16.mxu0 0
        %747 = vmatpush1.bf16.msra.mxu0 0
        %748 = vmatprep.subr.bf16.mxu0 0
        %749 = vmatpush1.bf16.msra.mxu0 0
        %750 = vmatprep.subr.bf16.mxu0 0
        %751 = vmatpush1.bf16.msra.mxu0 0
        %752 = vmatprep.subr.bf16.mxu0 0
        %753 = vmatpush1.bf16.msra.mxu0 %v737
        %754 = vmatprep.subr.bf16.mxu0 0
        %755 = vmatpush1.bf16.msra.mxu0 %v736
        %756 = vmatprep.subr.bf16.mxu0 0
        %757 = vmatpush2.bf16.msra.mxu0 0
        %758 = vmatprep.subr.bf16.mxu0 0
        %759 = vmatpush2.bf16.msra.mxu0 0
        %760 = vmatprep.subr.bf16.mxu0 0
        %761 = vmatpush2.bf16.msra.mxu0 0
        %762 = vmatprep.subr.bf16.mxu0 0
        %763 = vmatpush2.bf16.msra.mxu0 0
        %764 = vmatprep.subr.bf16.mxu0 0
        %765 = vmatpush2.bf16.msra.mxu0 0
        %766 = vmatprep.subr.bf16.mxu0 0
        %767 = vmatpush2.bf16.msra.mxu0 0
        %768 = vmatprep.subr.bf16.mxu0 0
        %769 = vmatpush2.bf16.msra.mxu0 0
        %770 = vmatprep.subr.bf16.mxu0 0
        %771 = vmatpush2.bf16.msra.mxu0 0
        %772 = vmatprep.mubr.bf16.mxu0 0
        %773 = vmatmul.mubr.bf16.gmra.mxu0 %v340
        %v774 = vpop.f32.mrf.mxu0
        %v775 = vadd.f32 0.0, %v774
        %v776 = vpop.f32.mrf.mxu0
        %v777 = vpop.f32.mrf.mxu0
        %v778 = vadd.f32 0.0, %v777
        %v779 = vpop.f32.mrf.mxu0
        %780 = vdwg.mxu0
        %v781 = vadd.f32 %v717, %v775
        %v782 = vadd.f32 %v720, %v778
        %s783 = scalar_lea.vmem [#allocation7], 112
        %v784 = vld [vmem:[%s783] sm:$0xf]
        %v785 = vld [vmem:[%s783 + $0x4] sm:$0xf]
        %v786 = vld [vmem:[%s783 + $0x8] sm:$0xf]
        %v787 = vld [vmem:[%s783 + $0xc] sm:$0xf]
        %v792 = vunpack.c.l.b16 %v784
        %v793 = vunpack.c.l.b16 %v785
        %v794 = vunpack.c.l.b16 %v786
        %v795 = vunpack.c.l.b16 %v787
        %v796 = vpack.c.b16 %v793, %v792
        %v797 = vpack.c.b16 %v795, %v794
        %800 = vmatprep.subr.bf16.mxu0 0
        %801 = vmatpush1.bf16.msra.mxu0 0
        %802 = vmatprep.subr.bf16.mxu0 0
        %803 = vmatpush1.bf16.msra.mxu0 0
        %804 = vmatprep.subr.bf16.mxu0 0
        %805 = vmatpush1.bf16.msra.mxu0 0
        %806 = vmatprep.subr.bf16.mxu0 0
        %807 = vmatpush1.bf16.msra.mxu0 0
        %808 = vmatprep.subr.bf16.mxu0 0
        %809 = vmatpush1.bf16.msra.mxu0 0
        %810 = vmatprep.subr.bf16.mxu0 0
        %811 = vmatpush1.bf16.msra.mxu0 0
        %812 = vmatprep.subr.bf16.mxu0 0
        %813 = vmatpush1.bf16.msra.mxu0 %v797
        %814 = vmatprep.subr.bf16.mxu0 0
        %815 = vmatpush1.bf16.msra.mxu0 %v796
        %816 = vmatprep.subr.bf16.mxu0 0
        %817 = vmatpush2.bf16.msra.mxu0 0
        %818 = vmatprep.subr.bf16.mxu0 0
        %819 = vmatpush2.bf16.msra.mxu0 0
        %820 = vmatprep.subr.bf16.mxu0 0
        %821 = vmatpush2.bf16.msra.mxu0 0
        %822 = vmatprep.subr.bf16.mxu0 0
        %823 = vmatpush2.bf16.msra.mxu0 0
        %824 = vmatprep.subr.bf16.mxu0 0
        %825 = vmatpush2.bf16.msra.mxu0 0
        %826 = vmatprep.subr.bf16.mxu0 0
        %827 = vmatpush2.bf16.msra.mxu0 0
        %828 = vmatprep.subr.bf16.mxu0 0
        %829 = vmatpush2.bf16.msra.mxu0 0
        %830 = vmatprep.subr.bf16.mxu0 0
        %831 = vmatpush2.bf16.msra.mxu0 0
        %832 = vmatprep.mubr.bf16.mxu0 0
        %833 = vmatmul.mubr.bf16.gmra.mxu0 %v546
        %v834 = vpop.f32.mrf.mxu0
        %v835 = vadd.f32 0.0, %v834
        %v836 = vpop.f32.mrf.mxu0
        %v837 = vpop.f32.mrf.mxu0
        %v838 = vadd.f32 0.0, %v837
        %v839 = vpop.f32.mrf.mxu0
        %840 = vdwg.mxu0
        %v841 = vadd.f32 %v781, %v835
        %v842 = vadd.f32 %v782, %v838
        %s843 = scalar_lea.vmem [#allocation7], 128
        %v844 = vld [vmem:[%s843] sm:$0xf]
        %v845 = vld [vmem:[%s843 + $0x4] sm:$0xf]
        %v846 = vld [vmem:[%s843 + $0x8] sm:$0xf]
        %v847 = vld [vmem:[%s843 + $0xc] sm:$0xf]
        %vm848 = vcmask 1042432
        %v849 = vrot.slane %v309, 5
        %v850 = vrot.slane %v310, 5
        %v851 = vsel %vm848, %v849, %v850
        %v856 = vunpack.c.l.b16 %v844
        %v857 = vunpack.c.l.b16 %v845
        %v858 = vunpack.c.l.b16 %v846
        %v859 = vunpack.c.l.b16 %v847
        %v860 = vpack.c.b16 %v857, %v856
        %v861 = vpack.c.b16 %v859, %v858
        %v865 = vsel %vm338, %v851, 0
        %867 = vmatprep.subr.bf16.mxu0 0
        %868 = vmatpush1.bf16.msra.mxu0 0
        %869 = vmatprep.subr.bf16.mxu0 0
        %870 = vmatpush1.bf16.msra.mxu0 0
        %871 = vmatprep.subr.bf16.mxu0 0
        %872 = vmatpush1.bf16.msra.mxu0 0
        %873 = vmatprep.subr.bf16.mxu0 0
        %874 = vmatpush1.bf16.msra.mxu0 0
        %875 = vmatprep.subr.bf16.mxu0 0
        %876 = vmatpush1.bf16.msra.mxu0 0
        %877 = vmatprep.subr.bf16.mxu0 0
        %878 = vmatpush1.bf16.msra.mxu0 0
        %879 = vmatprep.subr.bf16.mxu0 0
        %880 = vmatpush1.bf16.msra.mxu0 %v861
        %881 = vmatprep.subr.bf16.mxu0 0
        %882 = vmatpush1.bf16.msra.mxu0 %v860
        %883 = vmatprep.subr.bf16.mxu0 0
        %884 = vmatpush2.bf16.msra.mxu0 0
        %885 = vmatprep.subr.bf16.mxu0 0
        %886 = vmatpush2.bf16.msra.mxu0 0
        %887 = vmatprep.subr.bf16.mxu0 0
        %888 = vmatpush2.bf16.msra.mxu0 0
        %889 = vmatprep.subr.bf16.mxu0 0
        %890 = vmatpush2.bf16.msra.mxu0 0
        %891 = vmatprep.subr.bf16.mxu0 0
        %892 = vmatpush2.bf16.msra.mxu0 0
        %893 = vmatprep.subr.bf16.mxu0 0
        %894 = vmatpush2.bf16.msra.mxu0 0
        %895 = vmatprep.subr.bf16.mxu0 0
        %896 = vmatpush2.bf16.msra.mxu0 0
        %897 = vmatprep.subr.bf16.mxu0 0
        %898 = vmatpush2.bf16.msra.mxu0 0
        %899 = vmatprep.mubr.bf16.mxu0 0
        %900 = vmatmul.mubr.bf16.gmra.mxu0 %v865
        %v901 = vpop.f32.mrf.mxu0
        %v902 = vadd.f32 0.0, %v901
        %v903 = vpop.f32.mrf.mxu0
        %v904 = vpop.f32.mrf.mxu0
        %v905 = vadd.f32 0.0, %v904
        %v906 = vpop.f32.mrf.mxu0
        %907 = vdwg.mxu0
        %v908 = vadd.f32 %v841, %v902
        %v909 = vadd.f32 %v842, %v905
        %v910 = vld [vmem:[%s3 + $0x2] sm:$0x1]
        %v911 = vlaneseq
        %v912 = vshrl.u32 %v911, 7
        %v913 = vsub.s32 0, %v912
        %v914 = vrot.slane %v910, %v913
        %v915 = vadd.f32 %v908, %v914
        %v916 = vadd.f32 %v909, %v914
        %v917 = vmax.f32 %v598, %v915
        %v918 = vmax.f32 %v599, %v916
        %v919 = vmax.f32 %v917, 0.0
        %v920 = vmax.f32 %v918, 0.0
        %921 = vst.msk [vmem:[%s291] sm:$0xff] %vm338, %v919
        %922 = vst.msk [vmem:[%s291 + $0x8] sm:$0xff] %vm338, %v920
        %s923 = sand.u32 %s144, 1
        %s924 = scalar_lea.sflag [#allocation4], %s923
        %s925 = sand.u32 %s144, 1
        %s926 = smul.addr %s925, 16
        %s927 = scalar_lea.vmem [#allocation8], %s926
        // Predicated region
        $region49: #{tpu_custom_call.1} parent=35 // pred_check
          %p928 = pneg %p154
        $region50: #{tpu_custom_call.1} parent=35 // pred_check_branch
          %930 = sbr.rel (%p928) target = $region52
        $region51: #{tpu_custom_call.1} parent=35 // pred_region
          %s931 = smul.u32 2, %s29
          %s933 = ssub.s32 256, 256
          %934 = vsyncadd %s924, %s933
          %s935 = smul.addr %s28, 2
          %s936 = sadd.s32 %s931, %s935
          %s937 = smul.addr %s936, 128
          %s938 = scalar_lea.hbm %s4, %s937
          %s939 = sshll.u32 %s927, 4
          %s940 = int_to_ptr.vmem [resolvable:$true] %s939
          %945 = dma.vmem_to_hbm [thread:$0]  %s940, 256, %s938, %s924, 128, 128, 8
        $region52: #{tpu_custom_call.1} parent=35 // pred_fallthru
          _
      $region36: #{tpu_custom_call.1} parent=5 // pred_fallthru
        _
      %p946 = scmp.le.s32.totalorder 2, %s19
      // Predicated region
      $region53: #{tpu_custom_call.1} parent=5 // pred_check
        %p947 = pneg %p946
      $region54: #{tpu_custom_call.1} parent=5 // pred_check_branch
        %949 = sbr.rel (%p947) target = $region56
      $region55: #{tpu_custom_call.1} parent=5 // pred_region
        %s950 = ssub.s32 %s19, 2
        // Predicated region
        $region57: #{tpu_custom_call.1} parent=55 // pred_check
          %p951 = pneg %p160
        $region58: #{tpu_custom_call.1} parent=55 // pred_check_branch
          %953 = sbr.rel (%p951) target = $region60
        $region59: #{tpu_custom_call.1} parent=55 // pred_region
          %s954 = sand.u32 %s145, 1
          %s955 = scalar_lea.sflag [#allocation4], %s954
          %s956 = sand.u32 %s145, 1
          %s957 = smul.addr %s956, 16
          %s958 = scalar_lea.vmem [#allocation8], %s957
          %959 = dma.done %s955, 256
        $region60: #{tpu_custom_call.1} parent=55 // pred_fallthru
          _
      $region56: #{tpu_custom_call.1} parent=5 // pred_fallthru
        _
    $region6: #{tpu_custom_call.1} parent=1 // loop_footer
      %s23 = sadd.s32 1, %s19
    $region7: #{tpu_custom_call.1} parent=1 // loop_footer_branch
      %18 = sbr.rel target = $region3
    $region8: #{tpu_custom_call.1} parent=1 // loop_exit
      _
    %960 = vsyncpa [#allocation3], 1
    %s961 = scalar_lea.sflag [#allocation3], 1
    %962 = vsyncpa %s961, 1
    %963 = vsyncpa [#allocation6], 1
    %s964 = scalar_lea.sflag [#allocation6], 1
    %965 = vsyncpa %s964, 1
    %966 = vsyncpa [#allocation4], 1
    %s967 = scalar_lea.sflag [#allocation4], 1
    %968 = vsyncpa %s967, 1

</llo_original>
